<compile_context>
chip_gen: v5e
topology: v5e:2x2
jax: 0.10.0
libtpu: 0.0.40
codegen_flags: <defaults>
</compile_context>

<pallas_src>
import functools

import jax
import jax.numpy as jnp
from jax import lax
from jax.experimental import pallas as pl
from jax.experimental.pallas import tpu as pltpu


# ----------------------------------------------------------------------------
# Helpers
# ----------------------------------------------------------------------------
def _vmem_limit_bytes(frac=0.75, fallback=48 * 1024 * 1024):
    """Scoped-VMEM budget derived from the local chip's physical VMEM."""
    try:
        cap = getattr(pltpu.get_tpu_info(), "vmem_capacity_bytes", None)
        if cap:
            return int(cap * frac)
    except Exception:
        pass
    return fallback


def _resident_spec(shape, index_map):
    """BlockSpec for a block whose index never changes across the grid:
    single-buffer it (halves VMEM; matters most under v7x's 64 MiB)."""
    try:
        return pl.BlockSpec(shape, index_map, pipeline_mode=pl.Buffered(1))
    except TypeError:  # older jax without pipeline_mode -> default buffering
        return pl.BlockSpec(shape, index_map)


# ----------------------------------------------------------------------------
# Tiled dense (x @ W + b) kernel -- used for the hoisted input projection when
# input_size is not much smaller than hidden_size.
# ----------------------------------------------------------------------------
def _dense_kernel(x_ref, w_ref, b_ref, o_ref):
    w = w_ref[...]
    x = x_ref[...].astype(w.dtype)          # bf16 MXU operands, f32 accumulate
    o_ref[...] = (
        jnp.dot(x, w, preferred_element_type=jnp.float32) + b_ref[...]
    ).astype(o_ref.dtype)


def dense(x2d, w, b_row, *, tile_m=512, vmem_limit=None):
    """(M,K)@(K,N)+b, tiled over M with a resident single-buffered weight."""
    m, k = x2d.shape
    n = w.shape[1]
    tile_m = int(max(8, min(tile_m, m)))
    m_pad = pl.cdiv(m, tile_m) * tile_m
    if m_pad != m:
        x2d = jnp.pad(x2d, ((0, m_pad - m), (0, 0)))
    out = pl.pallas_call(
        _dense_kernel,
        out_shape=jax.ShapeDtypeStruct((m_pad, n), jnp.float32),
        grid=(m_pad // tile_m,),
        in_specs=[
            pl.BlockSpec((tile_m, k), lambda i: (i, 0)),
            _resident_spec((k, n), lambda i: (0, 0)),
            _resident_spec((1, n), lambda i: (0, 0)),
        ],
        out_specs=pl.BlockSpec((tile_m, n), lambda i: (i, 0)),
        compiler_params=pltpu.CompilerParams(
            dimension_semantics=("parallel",),
            vmem_limit_bytes=vmem_limit,
        ),
    )(x2d, w, b_row)
    return out[:m] if m_pad != m else out


# ----------------------------------------------------------------------------
# Fused recurrent chunk kernel: (optional) input projection + recurrence + fc
# head, one time-chunk per grid step along the last ("arbitrary") grid axis.
# ----------------------------------------------------------------------------
def make_rnn_chunk_kernel(alpha: float, t_chunk: int, fuse_input: bool,
                          unroll: int, mm_dtype):
    unroll = max(1, min(unroll, t_chunk))

    def kernel(*refs):
        if fuse_input:
            (x_ref, w_in_ref, b_comb_ref, w_h_ref, w_fc_ref, b_fc_ref,
             rnn_out_ref, out_ref, h_scratch) = refs
        else:
            (proj_ref, w_h_ref, w_fc_ref, b_fc_ref,
             rnn_out_ref, out_ref, h_scratch) = refs

        # New batch tile starts at the first time chunk -> reset hidden state.
        @pl.when(pl.program_id(1) == 0)
        def _():
            h_scratch[...] = jnp.zeros_like(h_scratch)

        tb, hid = h_scratch.shape
        w_h = w_h_ref[...]                   # resident recurrent weight

        if fuse_input:
            # One (t_chunk*tb, I)@(I, H) matmul per chunk; b_in + b_h folded in.
            # Stage the projection directly in rnn_out_ref (it is overwritten
            # step-by-step by the hidden state) -> no extra VMEM buffer.
            x = x_ref[...].astype(mm_dtype).reshape(t_chunk * tb, -1)
            proj = (jnp.dot(x, w_in_ref[...],
                            preferred_element_type=jnp.float32)
                    + b_comb_ref[...])
            rnn_out_ref[...] = proj.reshape(t_chunk, tb, hid)
            proj_src = rnn_out_ref
        else:
            proj_src = proj_ref              # bias already folded by `dense`

        def step(t, h):
            pre = proj_src[t] + jnp.dot(h.astype(mm_dtype), w_h,
                                        preferred_element_type=jnp.float32)
            h_act = jnp.maximum(pre, 0.0)    # relu on the VPU, f32
            if alpha == 1.0:                 # dt=None specialization
                h_new = h_act
            else:
                h_new = h * (1.0 - alpha) + h_act * alpha
            rnn_out_ref[t] = h_new
            return h_new

        # Carry h in registers within the chunk; touch scratch only at edges.
        h_final = lax.fori_loop(0, t_chunk, step, h_scratch[...], unroll=unroll)
        h_scratch[...] = h_final

        # Fused fc head: one (t_chunk*tb, H)@(H, O) matmul while the hidden
        # chunk is still resident in VMEM (no HBM re-read of rnn_output).
        h_chunk = rnn_out_ref[...].astype(mm_dtype).reshape(t_chunk * tb, hid)
        out = (jnp.dot(h_chunk, w_fc_ref[...],
                       preferred_element_type=jnp.float32)
               + b_fc_ref[...])
        out_ref[...] = out.reshape(t_chunk, tb, -1).astype(out_ref.dtype)

    return kernel


# ----------------------------------------------------------------------------
# Wrapper
# ----------------------------------------------------------------------------
def rnn_net_forward(x, params, alpha=1.0, t_chunk=32, tile_b=None,
                    matmul_dtype=jnp.bfloat16, fuse_input=None, unroll=8):
    """Pallas forward for RNNNet.

    x: (seq_len, batch, input_size) float32
    params: w_in (H,I), b_in (H,), w_h (H,H), b_h (H,), w_fc (O,H), b_fc (O,)
            in PyTorch nn.Linear conventions.
    Returns (out, rnn_output): (S,B,O) and (S,B,H), both float32.
    """
    seq_len, batch, input_size = x.shape
    hidden_size = params["w_in"].shape[0]
    output_size = params["w_fc"].shape[0]

    if fuse_input is None:
        # Fuse the input projection into the chunk kernel only when I << H.
        fuse_input = input_size * 2 <= hidden_size

    x = x.astype(jnp.float32)
    # Pre-transpose weights for plain (M,K)@(K,N) matmuls; cast matmul weights
    # to bf16 (f32 accumulation in-kernel); biases stay f32 on the accum path.
    w_in_t = jnp.transpose(params["w_in"]).astype(matmul_dtype)   # (I, H)
    w_h_t = jnp.transpose(params["w_h"]).astype(matmul_dtype)     # (H, H)
    w_fc_t = jnp.transpose(params["w_fc"]).astype(matmul_dtype)   # (H, O)
    # Fold b_h into the projection bias -> no per-timestep bias broadcast.
    b_comb = (params["b_in"] + params["b_h"]).reshape(1, hidden_size)
    b_comb = b_comb.astype(jnp.float32)
    b_fc = params["b_fc"].reshape(1, output_size).astype(jnp.float32)

    vmem_limit = _vmem_limit_bytes()

    # Batch tiling (v7x: pass tile_b = batch // 2 to use both TensorCores).
    if tile_b is None:
        tile_b = batch
    assert batch % tile_b == 0, "batch must be divisible by tile_b"
    n_b_tiles = batch // tile_b

    # Time chunking: prefer a chunk that divides seq_len (no padding at all);
    # otherwise pad only x ((S,B,I) - cheap), never an (S,B,H) array.
    t_chunk = max(1, min(int(t_chunk), seq_len))
    best = max(c for c in range(1, t_chunk + 1) if seq_len % c == 0)
    if best >= max(1, t_chunk // 2):
        t_chunk = best
        seq_pad = seq_len
    else:
        seq_pad = pl.cdiv(seq_len, t_chunk) * t_chunk
    n_chunks = seq_pad // t_chunk
    if seq_pad != seq_len:
        # Causal recurrence: padded tail steps never affect real outputs.
        x = jnp.pad(x, ((0, seq_pad - seq_len), (0, 0), (0, 0)))

    if fuse_input:
        chunk_in = x                                  # (S_pad, B, I)
        in_feat = input_size
    else:
        # Hoisted input projection as one tiled, pipelined matmul.
        proj = dense(x.reshape(seq_pad * batch, input_size), w_in_t, b_comb,
                     vmem_limit=vmem_limit)
        chunk_in = proj.reshape(seq_pad, batch, hidden_size)
        in_feat = hidden_size

    kernel = make_rnn_chunk_kernel(float(alpha), t_chunk, fuse_input, unroll,
                                   matmul_dtype)

    data_spec = pl.BlockSpec((t_chunk, tile_b, in_feat), lambda b, c: (c, b, 0))
    if fuse_input:
        operands = (chunk_in, w_in_t, b_comb, w_h_t, w_fc_t, b_fc)
        in_specs = [
            data_spec,
            _resident_spec((input_size, hidden_size), lambda b, c: (0, 0)),
            _resident_spec((1, hidden_size), lambda b, c: (0, 0)),
            _resident_spec((hidden_size, hidden_size), lambda b, c: (0, 0)),
            _resident_spec((hidden_size, output_size), lambda b, c: (0, 0)),
            _resident_spec((1, output_size), lambda b, c: (0, 0)),
        ]
    else:
        operands = (chunk_in, w_h_t, w_fc_t, b_fc)
        in_specs = [
            data_spec,
            _resident_spec((hidden_size, hidden_size), lambda b, c: (0, 0)),
            _resident_spec((hidden_size, output_size), lambda b, c: (0, 0)),
            _resident_spec((1, output_size), lambda b, c: (0, 0)),
        ]

    rnn_output, out = pl.pallas_call(
        kernel,
        out_shape=(
            jax.ShapeDtypeStruct((seq_pad, batch, hidden_size), jnp.float32),
            jax.ShapeDtypeStruct((seq_pad, batch, output_size), jnp.float32),
        ),
        grid_spec=pltpu.PrefetchScalarGridSpec(
            num_scalar_prefetch=0,
            grid=(n_b_tiles, n_chunks),
            in_specs=in_specs,
            out_specs=[
                pl.BlockSpec((t_chunk, tile_b, hidden_size),
                             lambda b, c: (c, b, 0)),
                pl.BlockSpec((t_chunk, tile_b, output_size),
                             lambda b, c: (c, b, 0)),
            ],
            scratch_shapes=[pltpu.VMEM((tile_b, hidden_size), jnp.float32)],
        ),
        compiler_params=pltpu.CompilerParams(
            # batch tiles are independent (megacore on v7x); time is sequential
            dimension_semantics=("parallel", "arbitrary"),
            vmem_limit_bytes=vmem_limit,
        ),
    )(*operands)

    if seq_pad != seq_len:
        rnn_output = rnn_output[:seq_len]
        out = out[:seq_len]
    return out, rnn_output


# ----------------------------------------------------------------------------
# Reference + init (for the in-script correctness check)
# ----------------------------------------------------------------------------
def init_params(key, input_size, hidden_size, output_size):
    """Deterministic init mimicking PyTorch nn.Linear (uniform +-1/sqrt(fan_in))."""
    ks = jax.random.split(key, 6)

    def lin(kw, kb, fan_in, shape_w, shape_b):
        bound = 1.0 / (fan_in ** 0.5)
        w = jax.random.uniform(kw, shape_w, jnp.float32, -bound, bound)
        b = jax.random.uniform(kb, shape_b, jnp.float32, -bound, bound)
        return w, b

    w_in, b_in = lin(ks[0], ks[1], input_size, (hidden_size, input_size), (hidden_size,))
    w_h, b_h = lin(ks[2], ks[3], hidden_size, (hidden_size, hidden_size), (hidden_size,))
    w_fc, b_fc = lin(ks[4], ks[5], hidden_size, (output_size, hidden_size), (output_size,))
    return dict(w_in=w_in, b_in=b_in, w_h=w_h, b_h=b_h, w_fc=w_fc, b_fc=b_fc)


def reference_forward(x, params, alpha=1.0):
    """Pure-JAX reference matching the PyTorch semantics."""
    seq_len, batch, _ = x.shape
    hidden_size = params["w_in"].shape[0]
    h = jnp.zeros((batch, hidden_size), jnp.float32)
    outs, rnn_outs = [], []
    for t in range(seq_len):
        inp = x[t] @ params["w_in"].T + params["b_in"]
        rec = h @ params["w_h"].T + params["b_h"]
        h_new = jnp.maximum(inp + rec, 0.0)
        h = h * (1.0 - alpha) + h_new * alpha
        rnn_outs.append(h)
        outs.append(h @ params["w_fc"].T + params["b_fc"])
    return jnp.stack(outs, 0), jnp.stack(rnn_outs, 0)


if __name__ == "__main__":
    # Small shapes consistent with the module: x is (seq_len, batch, input_size)
    seq_len, batch, input_size, hidden_size, output_size = 8, 2, 4, 32, 3
    alpha = 1.0  # CTRNN(dt=None) -> alpha = 1

    key = jax.random.PRNGKey(0)
    k_x, k_p = jax.random.split(key)
    x = jax.random.normal(k_x, (seq_len, batch, input_size), jnp.float32)
    params = init_params(k_p, input_size, hidden_size, output_size)

    out_gold, rnn_gold = reference_forward(x, params, alpha=alpha)

    # (a) f32 matmuls, fully fused kernel -- tight check vs f32 reference.
    fwd_f32 = jax.jit(functools.partial(rnn_net_forward, alpha=alpha,
                                        matmul_dtype=jnp.float32,
                                        fuse_input=True))
    out, rnn_out = fwd_f32(x, params)
    jax.block_until_ready((out, rnn_out))
    assert out.shape == (seq_len, batch, output_size)
    assert rnn_out.shape == (seq_len, batch, hidden_size)
    assert jnp.allclose(out, out_gold, atol=1e-5, rtol=1e-5)
    assert jnp.allclose(rnn_out, rnn_gold, atol=1e-5, rtol=1e-5)

    # (b) f32, hoisted input projection (exercises the tiled dense kernel).
    fwd_hoist = jax.jit(functools.partial(rnn_net_forward, alpha=alpha,
                                          matmul_dtype=jnp.float32,
                                          fuse_input=False))
    out_h, rnn_h = fwd_hoist(x, params)
    jax.block_until_ready((out_h, rnn_h))
    assert jnp.allclose(out_h, out_gold, atol=1e-5, rtol=1e-5)
    assert jnp.allclose(rnn_h, rnn_gold, atol=1e-5, rtol=1e-5)

    # (c) bf16 matmul operands / f32 accumulation (production path) --
    #     exactness is established by (a)/(b); this only checks the bf16 path
    #     is numerically sane.
    fwd_bf16 = jax.jit(functools.partial(rnn_net_forward, alpha=alpha,
                                         matmul_dtype=jnp.bfloat16))
    out_b, rnn_b = fwd_bf16(x, params)
    jax.block_until_ready((out_b, rnn_b))
    assert jnp.allclose(out_b, out_gold, atol=1e-1, rtol=1e-1)
    assert jnp.allclose(rnn_b, rnn_gold, atol=1e-1, rtol=1e-1)

    print("KERNEL_OK")
</pallas_src>

<mosaic_0001>
module attributes {stable_mosaic.version = 11 : i64} {
  func.func @kernel(%arg0: i32, %arg1: i32, %arg2: memref<8x2x4xf32, #tpu.memory_space<vmem>>, %arg3: memref<4x32xf32, #tpu.memory_space<vmem>>, %arg4: memref<1x32xf32, #tpu.memory_space<vmem>>, %arg5: memref<32x32xf32, #tpu.memory_space<vmem>>, %arg6: memref<32x3xf32, #tpu.memory_space<vmem>>, %arg7: memref<1x3xf32, #tpu.memory_space<vmem>>, %arg8: memref<8x2x32xf32, #tpu.memory_space<vmem>>, %arg9: memref<8x2x3xf32, #tpu.memory_space<vmem>>, %arg10: memref<2x32xf32, #tpu.memory_space<vmem>>) attributes {dimension_semantics = [#tpu.dimension_semantics<parallel>, #tpu.dimension_semantics<arbitrary>], iteration_bounds = array<i64: 1, 1>, scalar_prefetch = 0 : i64, scratch_operands = 1 : i64, tpu.core_type = #tpu.core_type<tc>, window_params = [{transform_indices = @transform_0, window_bounds = array<i64: 8, 2, 4>}, {pipeline_mode = #tpu.pipeline_mode<synchronous>, transform_indices = @transform_1, window_bounds = array<i64: 4, 32>}, {pipeline_mode = #tpu.pipeline_mode<synchronous>, transform_indices = @transform_2, window_bounds = array<i64: 1, 32>}, {pipeline_mode = #tpu.pipeline_mode<synchronous>, transform_indices = @transform_3, window_bounds = array<i64: 32, 32>}, {pipeline_mode = #tpu.pipeline_mode<synchronous>, transform_indices = @transform_4, window_bounds = array<i64: 32, 3>}, {pipeline_mode = #tpu.pipeline_mode<synchronous>, transform_indices = @transform_5, window_bounds = array<i64: 1, 3>}, {transform_indices = @transform_6, window_bounds = array<i64: 8, 2, 32>}, {transform_indices = @transform_7, window_bounds = array<i64: 8, 2, 3>}]} {
    %c0_i32 = arith.constant 0 : i32
    %0 = arith.cmpi eq, %arg1, %c0_i32 : i32
    %1 = arith.extui %0 : i1 to i32
    %c0_i32_0 = arith.constant 0 : i32
    %2 = arith.cmpi ne, %1, %c0_i32_0 : i32
    scf.if %2 {
      %cst_76 = arith.constant 0.000000e+00 : f32
      %112 = vector.broadcast %cst_76 : f32 to vector<2x32xf32>
      %c0_77 = arith.constant 0 : index
      %c0_78 = arith.constant 0 : index
      %113 = vector.load %arg10[%c0_77, %c0_78] : memref<2x32xf32, #tpu.memory_space<vmem>>, vector<2x32xf32>
      tpu.vector_store %arg10[%c0_77, %c0_78], %112 {strides = array<i32>} : memref<2x32xf32, #tpu.memory_space<vmem>>, vector<2x32xf32>,
    } else {
    }
    %c0 = arith.constant 0 : index
    %c0_1 = arith.constant 0 : index
    %3 = vector.load %arg5[%c0, %c0_1] : memref<32x32xf32, #tpu.memory_space<vmem>>, vector<32x32xf32>
    %c0_2 = arith.constant 0 : index
    %c0_3 = arith.constant 0 : index
    %c0_4 = arith.constant 0 : index
    %4 = vector.load %arg2[%c0_2, %c0_3, %c0_4] : memref<8x2x4xf32, #tpu.memory_space<vmem>>, vector<8x2x4xf32>
    %5 = vector.shape_cast %4 : vector<8x2x4xf32> to vector<16x4xf32>
    %c0_5 = arith.constant 0 : index
    %c0_6 = arith.constant 0 : index
    %6 = vector.load %arg3[%c0_5, %c0_6] : memref<4x32xf32, #tpu.memory_space<vmem>>, vector<4x32xf32>
    %cst = arith.constant dense<0.000000e+00> : vector<16x32xf32>
    %7 = tpu.matmul %5, %6, %cst {dimension_numbers = #tpu.dot_dimension_numbers<[1], [0], [0], [1], [0, 0, 1, 1], [], []>} : vector<16x4xf32>, vector<4x32xf32>, vector<16x32xf32> -> vector<16x32xf32>
    %c0_7 = arith.constant 0 : index
    %c0_8 = arith.constant 0 : index
    %8 = vector.load %arg4[%c0_7, %c0_8] : memref<1x32xf32, #tpu.memory_space<vmem>>, vector<1x32xf32>
    %9 = vector.broadcast %8 : vector<1x32xf32> to vector<16x32xf32>
    %10 = arith.addf %7, %9 : vector<16x32xf32>
    %11 = vector.shape_cast %10 : vector<16x32xf32> to vector<8x2x32xf32>
    %c0_9 = arith.constant 0 : index
    %c0_10 = arith.constant 0 : index
    %c0_11 = arith.constant 0 : index
    %12 = vector.load %arg8[%c0_9, %c0_10, %c0_11] : memref<8x2x32xf32, #tpu.memory_space<vmem>>, vector<8x2x32xf32>
    tpu.vector_store %arg8[%c0_9, %c0_10, %c0_11], %11 {strides = array<i32>} : memref<8x2x32xf32, #tpu.memory_space<vmem>>, vector<8x2x32xf32>,
    %c0_12 = arith.constant 0 : index
    %c0_13 = arith.constant 0 : index
    %13 = vector.load %arg10[%c0_12, %c0_13] : memref<2x32xf32, #tpu.memory_space<vmem>>, vector<2x32xf32>
    %c0_i32_14 = arith.constant 0 : i32
    %14 = arith.index_cast %c0_i32_14 : i32 to index
    %c0_15 = arith.constant 0 : index
    %c0_16 = arith.constant 0 : index
    %15 = vector.load %arg8[%14, %c0_15, %c0_16] : memref<8x2x32xf32, #tpu.memory_space<vmem>>, vector<1x2x32xf32>
    %16 = vector.shape_cast %15 : vector<1x2x32xf32> to vector<2x32xf32>
    %cst_17 = arith.constant dense<0.000000e+00> : vector<2x32xf32>
    %17 = tpu.matmul %13, %3, %cst_17 {dimension_numbers = #tpu.dot_dimension_numbers<[1], [0], [0], [1], [0, 0, 1, 1], [], []>} : vector<2x32xf32>, vector<32x32xf32>, vector<2x32xf32> -> vector<2x32xf32>
    %18 = arith.addf %16, %17 : vector<2x32xf32>
    %cst_18 = arith.constant 0.000000e+00 : f32
    %19 = vector.broadcast %cst_18 : f32 to vector<2x32xf32>
    %20 = arith.maximumf %18, %19 : vector<2x32xf32>
    %21 = arith.index_cast %c0_i32_14 : i32 to index
    %c0_19 = arith.constant 0 : index
    %c0_20 = arith.constant 0 : index
    %22 = vector.load %arg8[%21, %c0_19, %c0_20] : memref<8x2x32xf32, #tpu.memory_space<vmem>>, vector<1x2x32xf32>
    %23 = vector.shape_cast %22 : vector<1x2x32xf32> to vector<2x32xf32>
    %24 = vector.shape_cast %20 : vector<2x32xf32> to vector<1x2x32xf32>
    tpu.vector_store %arg8[%21, %c0_19, %c0_20], %24 {strides = array<i32>} : memref<8x2x32xf32, #tpu.memory_space<vmem>>, vector<1x2x32xf32>,
    %c1_i32 = arith.constant 1 : i32
    %25 = arith.index_cast %c1_i32 : i32 to index
    %c0_21 = arith.constant 0 : index
    %c0_22 = arith.constant 0 : index
    %26 = vector.load %arg8[%25, %c0_21, %c0_22] : memref<8x2x32xf32, #tpu.memory_space<vmem>>, vector<1x2x32xf32>
    %27 = vector.shape_cast %26 : vector<1x2x32xf32> to vector<2x32xf32>
    %cst_23 = arith.constant dense<0.000000e+00> : vector<2x32xf32>
    %28 = tpu.matmul %20, %3, %cst_23 {dimension_numbers = #tpu.dot_dimension_numbers<[1], [0], [0], [1], [0, 0, 1, 1], [], []>} : vector<2x32xf32>, vector<32x32xf32>, vector<2x32xf32> -> vector<2x32xf32>
    %29 = arith.addf %27, %28 : vector<2x32xf32>
    %cst_24 = arith.constant 0.000000e+00 : f32
    %30 = vector.broadcast %cst_24 : f32 to vector<2x32xf32>
    %31 = arith.maximumf %29, %30 : vector<2x32xf32>
    %32 = arith.index_cast %c1_i32 : i32 to index
    %c0_25 = arith.constant 0 : index
    %c0_26 = arith.constant 0 : index
    %33 = vector.load %arg8[%32, %c0_25, %c0_26] : memref<8x2x32xf32, #tpu.memory_space<vmem>>, vector<1x2x32xf32>
    %34 = vector.shape_cast %33 : vector<1x2x32xf32> to vector<2x32xf32>
    %35 = vector.shape_cast %31 : vector<2x32xf32> to vector<1x2x32xf32>
    tpu.vector_store %arg8[%32, %c0_25, %c0_26], %35 {strides = array<i32>} : memref<8x2x32xf32, #tpu.memory_space<vmem>>, vector<1x2x32xf32>,
    %c2_i32 = arith.constant 2 : i32
    %36 = arith.index_cast %c2_i32 : i32 to index
    %c0_27 = arith.constant 0 : index
    %c0_28 = arith.constant 0 : index
    %37 = vector.load %arg8[%36, %c0_27, %c0_28] : memref<8x2x32xf32, #tpu.memory_space<vmem>>, vector<1x2x32xf32>
    %38 = vector.shape_cast %37 : vector<1x2x32xf32> to vector<2x32xf32>
    %cst_29 = arith.constant dense<0.000000e+00> : vector<2x32xf32>
    %39 = tpu.matmul %31, %3, %cst_29 {dimension_numbers = #tpu.dot_dimension_numbers<[1], [0], [0], [1], [0, 0, 1, 1], [], []>} : vector<2x32xf32>, vector<32x32xf32>, vector<2x32xf32> -> vector<2x32xf32>
    %40 = arith.addf %38, %39 : vector<2x32xf32>
    %cst_30 = arith.constant 0.000000e+00 : f32
    %41 = vector.broadcast %cst_30 : f32 to vector<2x32xf32>
    %42 = arith.maximumf %40, %41 : vector<2x32xf32>
    %43 = arith.index_cast %c2_i32 : i32 to index
    %c0_31 = arith.constant 0 : index
    %c0_32 = arith.constant 0 : index
    %44 = vector.load %arg8[%43, %c0_31, %c0_32] : memref<8x2x32xf32, #tpu.memory_space<vmem>>, vector<1x2x32xf32>
    %45 = vector.shape_cast %44 : vector<1x2x32xf32> to vector<2x32xf32>
    %46 = vector.shape_cast %42 : vector<2x32xf32> to vector<1x2x32xf32>
    tpu.vector_store %arg8[%43, %c0_31, %c0_32], %46 {strides = array<i32>} : memref<8x2x32xf32, #tpu.memory_space<vmem>>, vector<1x2x32xf32>,
    %c3_i32 = arith.constant 3 : i32
    %47 = arith.index_cast %c3_i32 : i32 to index
    %c0_33 = arith.constant 0 : index
    %c0_34 = arith.constant 0 : index
    %48 = vector.load %arg8[%47, %c0_33, %c0_34] : memref<8x2x32xf32, #tpu.memory_space<vmem>>, vector<1x2x32xf32>
    %49 = vector.shape_cast %48 : vector<1x2x32xf32> to vector<2x32xf32>
    %cst_35 = arith.constant dense<0.000000e+00> : vector<2x32xf32>
    %50 = tpu.matmul %42, %3, %cst_35 {dimension_numbers = #tpu.dot_dimension_numbers<[1], [0], [0], [1], [0, 0, 1, 1], [], []>} : vector<2x32xf32>, vector<32x32xf32>, vector<2x32xf32> -> vector<2x32xf32>
    %51 = arith.addf %49, %50 : vector<2x32xf32>
    %cst_36 = arith.constant 0.000000e+00 : f32
    %52 = vector.broadcast %cst_36 : f32 to vector<2x32xf32>
    %53 = arith.maximumf %51, %52 : vector<2x32xf32>
    %54 = arith.index_cast %c3_i32 : i32 to index
    %c0_37 = arith.constant 0 : index
    %c0_38 = arith.constant 0 : index
    %55 = vector.load %arg8[%54, %c0_37, %c0_38] : memref<8x2x32xf32, #tpu.memory_space<vmem>>, vector<1x2x32xf32>
    %56 = vector.shape_cast %55 : vector<1x2x32xf32> to vector<2x32xf32>
    %57 = vector.shape_cast %53 : vector<2x32xf32> to vector<1x2x32xf32>
    tpu.vector_store %arg8[%54, %c0_37, %c0_38], %57 {strides = array<i32>} : memref<8x2x32xf32, #tpu.memory_space<vmem>>, vector<1x2x32xf32>,
    %c4_i32 = arith.constant 4 : i32
    %58 = arith.index_cast %c4_i32 : i32 to index
    %c0_39 = arith.constant 0 : index
    %c0_40 = arith.constant 0 : index
    %59 = vector.load %arg8[%58, %c0_39, %c0_40] : memref<8x2x32xf32, #tpu.memory_space<vmem>>, vector<1x2x32xf32>
    %60 = vector.shape_cast %59 : vector<1x2x32xf32> to vector<2x32xf32>
    %cst_41 = arith.constant dense<0.000000e+00> : vector<2x32xf32>
    %61 = tpu.matmul %53, %3, %cst_41 {dimension_numbers = #tpu.dot_dimension_numbers<[1], [0], [0], [1], [0, 0, 1, 1], [], []>} : vector<2x32xf32>, vector<32x32xf32>, vector<2x32xf32> -> vector<2x32xf32>
    %62 = arith.addf %60, %61 : vector<2x32xf32>
    %cst_42 = arith.constant 0.000000e+00 : f32
    %63 = vector.broadcast %cst_42 : f32 to vector<2x32xf32>
    %64 = arith.maximumf %62, %63 : vector<2x32xf32>
    %65 = arith.index_cast %c4_i32 : i32 to index
    %c0_43 = arith.constant 0 : index
    %c0_44 = arith.constant 0 : index
    %66 = vector.load %arg8[%65, %c0_43, %c0_44] : memref<8x2x32xf32, #tpu.memory_space<vmem>>, vector<1x2x32xf32>
    %67 = vector.shape_cast %66 : vector<1x2x32xf32> to vector<2x32xf32>
    %68 = vector.shape_cast %64 : vector<2x32xf32> to vector<1x2x32xf32>
    tpu.vector_store %arg8[%65, %c0_43, %c0_44], %68 {strides = array<i32>} : memref<8x2x32xf32, #tpu.memory_space<vmem>>, vector<1x2x32xf32>,
    %c5_i32 = arith.constant 5 : i32
    %69 = arith.index_cast %c5_i32 : i32 to index
    %c0_45 = arith.constant 0 : index
    %c0_46 = arith.constant 0 : index
    %70 = vector.load %arg8[%69, %c0_45, %c0_46] : memref<8x2x32xf32, #tpu.memory_space<vmem>>, vector<1x2x32xf32>
    %71 = vector.shape_cast %70 : vector<1x2x32xf32> to vector<2x32xf32>
    %cst_47 = arith.constant dense<0.000000e+00> : vector<2x32xf32>
    %72 = tpu.matmul %64, %3, %cst_47 {dimension_numbers = #tpu.dot_dimension_numbers<[1], [0], [0], [1], [0, 0, 1, 1], [], []>} : vector<2x32xf32>, vector<32x32xf32>, vector<2x32xf32> -> vector<2x32xf32>
    %73 = arith.addf %71, %72 : vector<2x32xf32>
    %cst_48 = arith.constant 0.000000e+00 : f32
    %74 = vector.broadcast %cst_48 : f32 to vector<2x32xf32>
    %75 = arith.maximumf %73, %74 : vector<2x32xf32>
    %76 = arith.index_cast %c5_i32 : i32 to index
    %c0_49 = arith.constant 0 : index
    %c0_50 = arith.constant 0 : index
    %77 = vector.load %arg8[%76, %c0_49, %c0_50] : memref<8x2x32xf32, #tpu.memory_space<vmem>>, vector<1x2x32xf32>
    %78 = vector.shape_cast %77 : vector<1x2x32xf32> to vector<2x32xf32>
    %79 = vector.shape_cast %75 : vector<2x32xf32> to vector<1x2x32xf32>
    tpu.vector_store %arg8[%76, %c0_49, %c0_50], %79 {strides = array<i32>} : memref<8x2x32xf32, #tpu.memory_space<vmem>>, vector<1x2x32xf32>,
    %c6_i32 = arith.constant 6 : i32
    %80 = arith.index_cast %c6_i32 : i32 to index
    %c0_51 = arith.constant 0 : index
    %c0_52 = arith.constant 0 : index
    %81 = vector.load %arg8[%80, %c0_51, %c0_52] : memref<8x2x32xf32, #tpu.memory_space<vmem>>, vector<1x2x32xf32>
    %82 = vector.shape_cast %81 : vector<1x2x32xf32> to vector<2x32xf32>
    %cst_53 = arith.constant dense<0.000000e+00> : vector<2x32xf32>
    %83 = tpu.matmul %75, %3, %cst_53 {dimension_numbers = #tpu.dot_dimension_numbers<[1], [0], [0], [1], [0, 0, 1, 1], [], []>} : vector<2x32xf32>, vector<32x32xf32>, vector<2x32xf32> -> vector<2x32xf32>
    %84 = arith.addf %82, %83 : vector<2x32xf32>
    %cst_54 = arith.constant 0.000000e+00 : f32
    %85 = vector.broadcast %cst_54 : f32 to vector<2x32xf32>
    %86 = arith.maximumf %84, %85 : vector<2x32xf32>
    %87 = arith.index_cast %c6_i32 : i32 to index
    %c0_55 = arith.constant 0 : index
    %c0_56 = arith.constant 0 : index
    %88 = vector.load %arg8[%87, %c0_55, %c0_56] : memref<8x2x32xf32, #tpu.memory_space<vmem>>, vector<1x2x32xf32>
    %89 = vector.shape_cast %88 : vector<1x2x32xf32> to vector<2x32xf32>
    %90 = vector.shape_cast %86 : vector<2x32xf32> to vector<1x2x32xf32>
    tpu.vector_store %arg8[%87, %c0_55, %c0_56], %90 {strides = array<i32>} : memref<8x2x32xf32, #tpu.memory_space<vmem>>, vector<1x2x32xf32>,
    %c7_i32 = arith.constant 7 : i32
    %91 = arith.index_cast %c7_i32 : i32 to index
    %c0_57 = arith.constant 0 : index
    %c0_58 = arith.constant 0 : index
    %92 = vector.load %arg8[%91, %c0_57, %c0_58] : memref<8x2x32xf32, #tpu.memory_space<vmem>>, vector<1x2x32xf32>
    %93 = vector.shape_cast %92 : vector<1x2x32xf32> to vector<2x32xf32>
    %cst_59 = arith.constant dense<0.000000e+00> : vector<2x32xf32>
    %94 = tpu.matmul %86, %3, %cst_59 {dimension_numbers = #tpu.dot_dimension_numbers<[1], [0], [0], [1], [0, 0, 1, 1], [], []>} : vector<2x32xf32>, vector<32x32xf32>, vector<2x32xf32> -> vector<2x32xf32>
    %95 = arith.addf %93, %94 : vector<2x32xf32>
    %cst_60 = arith.constant 0.000000e+00 : f32
    %96 = vector.broadcast %cst_60 : f32 to vector<2x32xf32>
    %97 = arith.maximumf %95, %96 : vector<2x32xf32>
    %98 = arith.index_cast %c7_i32 : i32 to index
    %c0_61 = arith.constant 0 : index
    %c0_62 = arith.constant 0 : index
    %99 = vector.load %arg8[%98, %c0_61, %c0_62] : memref<8x2x32xf32, #tpu.memory_space<vmem>>, vector<1x2x32xf32>
    %100 = vector.shape_cast %99 : vector<1x2x32xf32> to vector<2x32xf32>
    %101 = vector.shape_cast %97 : vector<2x32xf32> to vector<1x2x32xf32>
    tpu.vector_store %arg8[%98, %c0_61, %c0_62], %101 {strides = array<i32>} : memref<8x2x32xf32, #tpu.memory_space<vmem>>, vector<1x2x32xf32>,
    %c8_i32 = arith.constant 8 : i32
    %c0_63 = arith.constant 0 : index
    %c0_64 = arith.constant 0 : index
    %102 = vector.load %arg10[%c0_63, %c0_64] : memref<2x32xf32, #tpu.memory_space<vmem>>, vector<2x32xf32>
    tpu.vector_store %arg10[%c0_63, %c0_64], %97 {strides = array<i32>} : memref<2x32xf32, #tpu.memory_space<vmem>>, vector<2x32xf32>,
    %c0_65 = arith.constant 0 : index
    %c0_66 = arith.constant 0 : index
    %c0_67 = arith.constant 0 : index
    %103 = vector.load %arg8[%c0_65, %c0_66, %c0_67] : memref<8x2x32xf32, #tpu.memory_space<vmem>>, vector<8x2x32xf32>
    %104 = vector.shape_cast %103 : vector<8x2x32xf32> to vector<16x32xf32>
    %c0_68 = arith.constant 0 : index
    %c0_69 = arith.constant 0 : index
    %105 = vector.load %arg6[%c0_68, %c0_69] : memref<32x3xf32, #tpu.memory_space<vmem>>, vector<32x3xf32>
    %cst_70 = arith.constant dense<0.000000e+00> : vector<16x3xf32>
    %106 = tpu.matmul %104, %105, %cst_70 {dimension_numbers = #tpu.dot_dimension_numbers<[1], [0], [0], [1], [0, 0, 1, 1], [], []>} : vector<16x32xf32>, vector<32x3xf32>, vector<16x3xf32> -> vector<16x3xf32>
    %c0_71 = arith.constant 0 : index
    %c0_72 = arith.constant 0 : index
    %107 = vector.load %arg7[%c0_71, %c0_72] : memref<1x3xf32, #tpu.memory_space<vmem>>, vector<1x3xf32>
    %108 = vector.broadcast %107 : vector<1x3xf32> to vector<16x3xf32>
    %109 = arith.addf %106, %108 : vector<16x3xf32>
    %110 = vector.shape_cast %109 : vector<16x3xf32> to vector<8x2x3xf32>
    %c0_73 = arith.constant 0 : index
    %c0_74 = arith.constant 0 : index
    %c0_75 = arith.constant 0 : index
    %111 = vector.load %arg9[%c0_73, %c0_74, %c0_75] : memref<8x2x3xf32, #tpu.memory_space<vmem>>, vector<8x2x3xf32>
    tpu.vector_store %arg9[%c0_73, %c0_74, %c0_75], %110 {strides = array<i32>} : memref<8x2x3xf32, #tpu.memory_space<vmem>>, vector<8x2x3xf32>,
    return
  }
  func.func @transform_0(%arg0: i32, %arg1: i32) -> (i32, i32, i32) {
    %c0_i32 = arith.constant 0 : i32
    %c0_i32_0 = arith.constant 0 : i32
    return %arg1, %arg0, %c0_i32 : i32, i32, i32
  }
  func.func @transform_1(%arg0: i32, %arg1: i32) -> (i32, i32) {
    %c0_i32 = arith.constant 0 : i32
    %c0_i32_0 = arith.constant 0 : i32
    %c0_i32_1 = arith.constant 0 : i32
    return %c0_i32, %c0_i32_0 : i32, i32
  }
  func.func @transform_2(%arg0: i32, %arg1: i32) -> (i32, i32) {
    %c0_i32 = arith.constant 0 : i32
    %c0_i32_0 = arith.constant 0 : i32
    %c0_i32_1 = arith.constant 0 : i32
    return %c0_i32, %c0_i32_0 : i32, i32
  }
  func.func @transform_3(%arg0: i32, %arg1: i32) -> (i32, i32) {
    %c0_i32 = arith.constant 0 : i32
    %c0_i32_0 = arith.constant 0 : i32
    %c0_i32_1 = arith.constant 0 : i32
    return %c0_i32, %c0_i32_0 : i32, i32
  }
  func.func @transform_4(%arg0: i32, %arg1: i32) -> (i32, i32) {
    %c0_i32 = arith.constant 0 : i32
    %c0_i32_0 = arith.constant 0 : i32
    %c0_i32_1 = arith.constant 0 : i32
    return %c0_i32, %c0_i32_0 : i32, i32
  }
  func.func @transform_5(%arg0: i32, %arg1: i32) -> (i32, i32) {
    %c0_i32 = arith.constant 0 : i32
    %c0_i32_0 = arith.constant 0 : i32
    %c0_i32_1 = arith.constant 0 : i32
    return %c0_i32, %c0_i32_0 : i32, i32
  }
  func.func @transform_6(%arg0: i32, %arg1: i32) -> (i32, i32, i32) {
    %c0_i32 = arith.constant 0 : i32
    %c0_i32_0 = arith.constant 0 : i32
    return %arg1, %arg0, %c0_i32 : i32, i32, i32
  }
  func.func @transform_7(%arg0: i32, %arg1: i32) -> (i32, i32, i32) {
    %c0_i32 = arith.constant 0 : i32
    %c0_i32_0 = arith.constant 0 : i32
    return %arg1, %arg0, %c0_i32 : i32, i32, i32
  }
}

</mosaic_0001>

<llo_original>
// kernel: rnn_net_forward.1
$region0: #{rnn_net_forward.1}
  #allocation0 [shape = 'u32[]', space=smem, size = 0x4, offset = 0x4, fixed_abs, tag = 'smem constant byte address 0x4 - core index']
  #allocation1 [shape = 'u32[72,128]{1,0:T(1,128)}', space=vmem, size = 0x9000, scoped, tag = 'internal scratch']
  #allocation2 [shape = 'f32[2,32]{1,0:T(2,128)}', space=vmem, size = 0x400, scoped, tag = 'scratch operand']
  %s0 = inlined_call_operand.vmem [shape: f32[8,2,4], index: 0, kind: input, shape index: {}]
  %s1 = inlined_call_operand.vmem [shape: f32[4,32], index: 1, kind: input, shape index: {}]
  %s2 = inlined_call_operand.vmem [shape: f32[1,32], index: 2, kind: input, shape index: {}]
  %s3 = inlined_call_operand.vmem [shape: f32[32,32], index: 3, kind: input, shape index: {}]
  %s4 = inlined_call_operand.vmem [shape: f32[32,3], index: 4, kind: input, shape index: {}]
  %s5 = inlined_call_operand.vmem [shape: f32[1,3], index: 5, kind: input, shape index: {}]
  %s6 = inlined_call_operand.hbm [shape: f32[8,2,32], index: 6, kind: output, shape index: {0}]
  %s7 = inlined_call_operand.vmem [shape: f32[8,2,3], index: 7, kind: output, shape index: {1}]
  %8 = xla_tuple %s6, %s7
  %s9 = sld [smem:[#allocation0]]
  $region46: #{rnn_net_forward.1} parent=0
    _
  %s11 = ssub.s32 1, %s9
  %s12 = scalar_select 0, %s11, %s9
  $region1: #{rnn_net_forward.1} parent=0
    #allocation3 [shape = 'u8[8192]{0}', space=vmem, size = 0x2000, scoped, tag = 'output window, operand 0, single buffered']
    #allocation4 [shape = 's32[1]{0}', space=sflag, size = 0x4, scoped, tag = 'scoped memory for rnn_net_forward.1']
    %13 = vsyncpa [#allocation4], 0
    // Predicated region
    $region2: #{rnn_net_forward.1} parent=1 // pred_check
      _
    $region3: #{rnn_net_forward.1} parent=1 // pred_check_branch
      %15 = sbr.rel (0) target = $region5
    $region4: #{rnn_net_forward.1} parent=1 // pred_region
      _
    $region5: #{rnn_net_forward.1} parent=1 // pred_fallthru
      _
    // Predicated region
    $region6: #{rnn_net_forward.1} parent=1 // pred_check
      _
    $region7: #{rnn_net_forward.1} parent=1 // pred_check_branch
      %17 = sbr.rel (0) target = $region9
    $region8: #{rnn_net_forward.1} parent=1 // pred_region
      _
    $region9: #{rnn_net_forward.1} parent=1 // pred_fallthru
      _
    // Predicated region
    $region10: #{rnn_net_forward.1} parent=1 // pred_check
      _
    $region11: #{rnn_net_forward.1} parent=1 // pred_check_branch
      %19 = sbr.rel (0) target = $region13
    $region12: #{rnn_net_forward.1} parent=1 // pred_region
      _
    $region13: #{rnn_net_forward.1} parent=1 // pred_fallthru
      _
    // Predicated region
    $region14: #{rnn_net_forward.1} parent=1 // pred_check
      _
    $region15: #{rnn_net_forward.1} parent=1 // pred_check_branch
      %21 = sbr.rel (0) target = $region17
    $region16: #{rnn_net_forward.1} parent=1 // pred_region
      _
    $region17: #{rnn_net_forward.1} parent=1 // pred_fallthru
      _
    // Predicated region
    $region18: #{rnn_net_forward.1} parent=1 // pred_check
      _
    $region19: #{rnn_net_forward.1} parent=1 // pred_check_branch
      %23 = sbr.rel (0) target = $region21
    $region20: #{rnn_net_forward.1} parent=1 // pred_region
      _
    $region21: #{rnn_net_forward.1} parent=1 // pred_fallthru
      _
    // Predicated region
    $region22: #{rnn_net_forward.1} parent=1 // pred_check
      _
    $region23: #{rnn_net_forward.1} parent=1 // pred_check_branch
      %25 = sbr.rel (0) target = $region25
    $region24: #{rnn_net_forward.1} parent=1 // pred_region
      _
    $region25: #{rnn_net_forward.1} parent=1 // pred_fallthru
      _
    %p26 = scmp.eq.s32.totalorder 0, 0
    // Predicated region
    $region26: #{rnn_net_forward.1} parent=1 // pred_check
      %p27 = pneg %p26
    $region27: #{rnn_net_forward.1} parent=1 // pred_check_branch
      %29 = sbr.rel (%p27) target = $region29
    $region28: #{rnn_net_forward.1} parent=1 // pred_region
      %vm30 = vcmask 254976
      %31 = vst.msk [vmem:[#allocation2] sm:$0x3] %vm30, 0.0
    $region29: #{rnn_net_forward.1} parent=1 // pred_fallthru
      _
    %v32 = vld [vmem:[%s3] sm:$0xff]
    %v33 = vld [vmem:[%s3 + $0x8] sm:$0xff]
    %v34 = vld [vmem:[%s3 + $0x10] sm:$0xff]
    %v35 = vld [vmem:[%s3 + $0x18] sm:$0xff]
    %v36 = vld [vmem:[%s0] sm:$0x3]
    %v37 = vld [vmem:[%s0 + $0x2] sm:$0x3]
    %v38 = vld [vmem:[%s0 + $0x4] sm:$0x3]
    %v39 = vld [vmem:[%s0 + $0x6] sm:$0x3]
    %v40 = vld [vmem:[%s0 + $0x8] sm:$0x3]
    %v41 = vld [vmem:[%s0 + $0xa] sm:$0x3]
    %v42 = vld [vmem:[%s0 + $0xc] sm:$0x3]
    %v43 = vld [vmem:[%s0 + $0xe] sm:$0x3]
    %v44 = vld [vmem:[%s1] sm:$0xf]
    %v45 = vld [vmem:[%s2] sm:$0x1]
    %v47 = vperm.slane %v45, 0
    %57 = vst [vmem:[#allocation1] ss:$4 sm:$0xff] %v36
    %s58 = scalar_lea.vmem [#allocation1], 1
    %59 = vst [vmem:[%s58] ss:$4 sm:$0xff] %v37
    %s60 = scalar_lea.vmem [#allocation1], 2
    %61 = vst [vmem:[%s60] ss:$4 sm:$0xff] %v38
    %s62 = scalar_lea.vmem [#allocation1], 3
    %63 = vst [vmem:[%s62] ss:$4 sm:$0xff] %v39
    %s64 = scalar_lea.vmem [#allocation1], 32
    %65 = vst [vmem:[%s64] ss:$4 sm:$0xff] %v40
    %s66 = scalar_lea.vmem [#allocation1], 33
    %67 = vst [vmem:[%s66] ss:$4 sm:$0xff] %v41
    %s68 = scalar_lea.vmem [#allocation1], 34
    %69 = vst [vmem:[%s68] ss:$4 sm:$0xff] %v42
    %s70 = scalar_lea.vmem [#allocation1], 35
    %71 = vst [vmem:[%s70] ss:$4 sm:$0xff] %v43
    %v72 = vld.sshfl [vmem:[#allocation1] sm:$0xff pattern:$0x73625140]
    %v73 = vld.sshfl [vmem:[#allocation1 + $0x20] sm:$0xff pattern:$0x73625140]
    %vm74 = vcmask 31744
    %v75 = vsel %vm74, %v72, 0
    %v77 = vsel %vm74, %v73, 0
    %vm79 = vcmask 1043456
    %v81 = vsel %vm79, %v44, 0
    %83 = vmatpush.msra.mxu0 0.0
    %84 = vmatpush.msra.mxu0 0.0
    %85 = vmatpush.msra.mxu0 0.0
    %86 = vmatpush.msra.mxu0 0.0
    %87 = vmatpush.msra.mxu0 0.0
    %88 = vmatpush.msra.mxu0 0.0
    %89 = vmatpush.msra.mxu0 0.0
    %90 = vmatpush.msra.mxu0 0.0
    %91 = vmatpush.msra.mxu0 0.0
    %92 = vmatpush.msra.mxu0 0.0
    %93 = vmatpush.msra.mxu0 0.0
    %94 = vmatpush.msra.mxu0 0.0
    %95 = vmatpush.msra.mxu0 0.0
    %96 = vmatpush.msra.mxu0 0.0
    %97 = vmatpush.msra.mxu0 0.0
    %98 = vmatpush.msra.mxu0 %v81
    %99 = vmatmul.f32.gmra.mxu0 %v75
    %v100 = vpop.f32.mrf.mxu0
    %v101 = vadd.f32 %v47, %v100
    %102 = vmatmul.f32.gmra.mxu0 %v77
    %v103 = vpop.f32.mrf.mxu0
    %v104 = vadd.f32 %v47, %v103
    %105 = vdwg.mxu0
    %v108 = vrot.slane %v101, 2
    %v109 = vrot.slane %v101, 4
    %v110 = vrot.slane %v101, 6
    %v111 = vrot.slane %v104, 2
    %v112 = vrot.slane %v104, 4
    %v113 = vrot.slane %v104, 6
    %vm120 = vcmask 254976
    %121 = vst.msk [vmem:[#allocation3] sm:$0x3] %vm120, %v101
    %122 = vst.msk [vmem:[#allocation3 + $0x2] sm:$0x3] %vm120, %v108
    %123 = vst.msk [vmem:[#allocation3 + $0x4] sm:$0x3] %vm120, %v109
    %124 = vst.msk [vmem:[#allocation3 + $0x6] sm:$0x3] %vm120, %v110
    %125 = vst.msk [vmem:[#allocation3 + $0x8] sm:$0x3] %vm120, %v104
    %126 = vst.msk [vmem:[#allocation3 + $0xa] sm:$0x3] %vm120, %v111
    %127 = vst.msk [vmem:[#allocation3 + $0xc] sm:$0x3] %vm120, %v112
    %128 = vst.msk [vmem:[#allocation3 + $0xe] sm:$0x3] %vm120, %v113
    %v129 = vld [vmem:[#allocation2] sm:$0x3]
    %v130 = vld [vmem:[#allocation3] sm:$0x3]
    %vm131 = vcmask 261120
    %v133 = vsel %vm131, %v129, 0
    %135 = vmatpush.msra.mxu0 0.0
    %136 = vmatpush.msra.mxu0 0.0
    %137 = vmatpush.msra.mxu0 0.0
    %138 = vmatpush.msra.mxu0 0.0
    %139 = vmatpush.msra.mxu0 0.0
    %140 = vmatpush.msra.mxu0 0.0
    %141 = vmatpush.msra.mxu0 0.0
    %142 = vmatpush.msra.mxu0 0.0
    %143 = vmatpush.msra.mxu0 0.0
    %144 = vmatpush.msra.mxu0 0.0
    %145 = vmatpush.msra.mxu0 0.0
    %146 = vmatpush.msra.mxu0 0.0
    %147 = vmatpush.msra.mxu0 %v35
    %148 = vmatpush.msra.mxu0 %v34
    %149 = vmatpush.msra.mxu0 %v33
    %150 = vmatpush.msra.mxu0 %v32
    %151 = vmatmul.f32.gmra.mxu0 %v133
    %v152 = vpop.f32.mrf.mxu0
    %v153 = vadd.f32 0.0, %v152
    %154 = vdwg.mxu0
    %v155 = vadd.f32 %v130, %v153
    %v156 = vmax.f32 %v155, 0.0
    %157 = vst.msk [vmem:[#allocation3] sm:$0x3] %vm120, %v156
    %s158 = scalar_lea.vmem [#allocation3], 2
    %v159 = vld [vmem:[%s158] sm:$0x3]
    %v161 = vsel %vm131, %v156, 0
    %163 = vmatpush.msra.mxu0 0.0
    %164 = vmatpush.msra.mxu0 0.0
    %165 = vmatpush.msra.mxu0 0.0
    %166 = vmatpush.msra.mxu0 0.0
    %167 = vmatpush.msra.mxu0 0.0
    %168 = vmatpush.msra.mxu0 0.0
    %169 = vmatpush.msra.mxu0 0.0
    %170 = vmatpush.msra.mxu0 0.0
    %171 = vmatpush.msra.mxu0 0.0
    %172 = vmatpush.msra.mxu0 0.0
    %173 = vmatpush.msra.mxu0 0.0
    %174 = vmatpush.msra.mxu0 0.0
    %175 = vmatpush.msra.mxu0 %v35
    %176 = vmatpush.msra.mxu0 %v34
    %177 = vmatpush.msra.mxu0 %v33
    %178 = vmatpush.msra.mxu0 %v32
    %179 = vmatmul.f32.gmra.mxu0 %v161
    %v180 = vpop.f32.mrf.mxu0
    %v181 = vadd.f32 0.0, %v180
    %182 = vdwg.mxu0
    %v183 = vadd.f32 %v159, %v181
    %v184 = vmax.f32 %v183, 0.0
    %185 = vst.msk [vmem:[%s158] sm:$0x3] %vm120, %v184
    %s186 = scalar_lea.vmem [#allocation3], 4
    %v187 = vld [vmem:[%s186] sm:$0x3]
    %v189 = vsel %vm131, %v184, 0
    %191 = vmatpush.msra.mxu0 0.0
    %192 = vmatpush.msra.mxu0 0.0
    %193 = vmatpush.msra.mxu0 0.0
    %194 = vmatpush.msra.mxu0 0.0
    %195 = vmatpush.msra.mxu0 0.0
    %196 = vmatpush.msra.mxu0 0.0
    %197 = vmatpush.msra.mxu0 0.0
    %198 = vmatpush.msra.mxu0 0.0
    %199 = vmatpush.msra.mxu0 0.0
    %200 = vmatpush.msra.mxu0 0.0
    %201 = vmatpush.msra.mxu0 0.0
    %202 = vmatpush.msra.mxu0 0.0
    %203 = vmatpush.msra.mxu0 %v35
    %204 = vmatpush.msra.mxu0 %v34
    %205 = vmatpush.msra.mxu0 %v33
    %206 = vmatpush.msra.mxu0 %v32
    %207 = vmatmul.f32.gmra.mxu0 %v189
    %v208 = vpop.f32.mrf.mxu0
    %v209 = vadd.f32 0.0, %v208
    %210 = vdwg.mxu0
    %v211 = vadd.f32 %v187, %v209
    %v212 = vmax.f32 %v211, 0.0
    %213 = vst.msk [vmem:[%s186] sm:$0x3] %vm120, %v212
    %s214 = scalar_lea.vmem [#allocation3], 6
    %v215 = vld [vmem:[%s214] sm:$0x3]
    %v217 = vsel %vm131, %v212, 0
    %219 = vmatpush.msra.mxu0 0.0
    %220 = vmatpush.msra.mxu0 0.0
    %221 = vmatpush.msra.mxu0 0.0
    %222 = vmatpush.msra.mxu0 0.0
    %223 = vmatpush.msra.mxu0 0.0
    %224 = vmatpush.msra.mxu0 0.0
    %225 = vmatpush.msra.mxu0 0.0
    %226 = vmatpush.msra.mxu0 0.0
    %227 = vmatpush.msra.mxu0 0.0
    %228 = vmatpush.msra.mxu0 0.0
    %229 = vmatpush.msra.mxu0 0.0
    %230 = vmatpush.msra.mxu0 0.0
    %231 = vmatpush.msra.mxu0 %v35
    %232 = vmatpush.msra.mxu0 %v34
    %233 = vmatpush.msra.mxu0 %v33
    %234 = vmatpush.msra.mxu0 %v32
    %235 = vmatmul.f32.gmra.mxu0 %v217
    %v236 = vpop.f32.mrf.mxu0
    %v237 = vadd.f32 0.0, %v236
    %238 = vdwg.mxu0
    %v239 = vadd.f32 %v215, %v237
    %v240 = vmax.f32 %v239, 0.0
    %241 = vst.msk [vmem:[%s214] sm:$0x3] %vm120, %v240
    %s242 = scalar_lea.vmem [#allocation3], 8
    %v243 = vld [vmem:[%s242] sm:$0x3]
    %v245 = vsel %vm131, %v240, 0
    %247 = vmatpush.msra.mxu0 0.0
    %248 = vmatpush.msra.mxu0 0.0
    %249 = vmatpush.msra.mxu0 0.0
    %250 = vmatpush.msra.mxu0 0.0
    %251 = vmatpush.msra.mxu0 0.0
    %252 = vmatpush.msra.mxu0 0.0
    %253 = vmatpush.msra.mxu0 0.0
    %254 = vmatpush.msra.mxu0 0.0
    %255 = vmatpush.msra.mxu0 0.0
    %256 = vmatpush.msra.mxu0 0.0
    %257 = vmatpush.msra.mxu0 0.0
    %258 = vmatpush.msra.mxu0 0.0
    %259 = vmatpush.msra.mxu0 %v35
    %260 = vmatpush.msra.mxu0 %v34
    %261 = vmatpush.msra.mxu0 %v33
    %262 = vmatpush.msra.mxu0 %v32
    %263 = vmatmul.f32.gmra.mxu0 %v245
    %v264 = vpop.f32.mrf.mxu0
    %v265 = vadd.f32 0.0, %v264
    %266 = vdwg.mxu0
    %v267 = vadd.f32 %v243, %v265
    %v268 = vmax.f32 %v267, 0.0
    %269 = vst.msk [vmem:[%s242] sm:$0x3] %vm120, %v268
    %s270 = scalar_lea.vmem [#allocation3], 10
    %v271 = vld [vmem:[%s270] sm:$0x3]
    %v273 = vsel %vm131, %v268, 0
    %275 = vmatpush.msra.mxu0 0.0
    %276 = vmatpush.msra.mxu0 0.0
    %277 = vmatpush.msra.mxu0 0.0
    %278 = vmatpush.msra.mxu0 0.0
    %279 = vmatpush.msra.mxu0 0.0
    %280 = vmatpush.msra.mxu0 0.0
    %281 = vmatpush.msra.mxu0 0.0
    %282 = vmatpush.msra.mxu0 0.0
    %283 = vmatpush.msra.mxu0 0.0
    %284 = vmatpush.msra.mxu0 0.0
    %285 = vmatpush.msra.mxu0 0.0
    %286 = vmatpush.msra.mxu0 0.0
    %287 = vmatpush.msra.mxu0 %v35
    %288 = vmatpush.msra.mxu0 %v34
    %289 = vmatpush.msra.mxu0 %v33
    %290 = vmatpush.msra.mxu0 %v32
    %291 = vmatmul.f32.gmra.mxu0 %v273
    %v292 = vpop.f32.mrf.mxu0
    %v293 = vadd.f32 0.0, %v292
    %294 = vdwg.mxu0
    %v295 = vadd.f32 %v271, %v293
    %v296 = vmax.f32 %v295, 0.0
    %297 = vst.msk [vmem:[%s270] sm:$0x3] %vm120, %v296
    %s298 = scalar_lea.vmem [#allocation3], 12
    %v299 = vld [vmem:[%s298] sm:$0x3]
    %v301 = vsel %vm131, %v296, 0
    %303 = vmatpush.msra.mxu0 0.0
    %304 = vmatpush.msra.mxu0 0.0
    %305 = vmatpush.msra.mxu0 0.0
    %306 = vmatpush.msra.mxu0 0.0
    %307 = vmatpush.msra.mxu0 0.0
    %308 = vmatpush.msra.mxu0 0.0
    %309 = vmatpush.msra.mxu0 0.0
    %310 = vmatpush.msra.mxu0 0.0
    %311 = vmatpush.msra.mxu0 0.0
    %312 = vmatpush.msra.mxu0 0.0
    %313 = vmatpush.msra.mxu0 0.0
    %314 = vmatpush.msra.mxu0 0.0
    %315 = vmatpush.msra.mxu0 %v35
    %316 = vmatpush.msra.mxu0 %v34
    %317 = vmatpush.msra.mxu0 %v33
    %318 = vmatpush.msra.mxu0 %v32
    %319 = vmatmul.f32.gmra.mxu0 %v301
    %v320 = vpop.f32.mrf.mxu0
    %v321 = vadd.f32 0.0, %v320
    %322 = vdwg.mxu0
    %v323 = vadd.f32 %v299, %v321
    %v324 = vmax.f32 %v323, 0.0
    %325 = vst.msk [vmem:[%s298] sm:$0x3] %vm120, %v324
    %s326 = scalar_lea.vmem [#allocation3], 14
    %v327 = vld [vmem:[%s326] sm:$0x3]
    %v329 = vsel %vm131, %v324, 0
    %331 = vmatpush.msra.mxu0 0.0
    %332 = vmatpush.msra.mxu0 0.0
    %333 = vmatpush.msra.mxu0 0.0
    %334 = vmatpush.msra.mxu0 0.0
    %335 = vmatpush.msra.mxu0 0.0
    %336 = vmatpush.msra.mxu0 0.0
    %337 = vmatpush.msra.mxu0 0.0
    %338 = vmatpush.msra.mxu0 0.0
    %339 = vmatpush.msra.mxu0 0.0
    %340 = vmatpush.msra.mxu0 0.0
    %341 = vmatpush.msra.mxu0 0.0
    %342 = vmatpush.msra.mxu0 0.0
    %343 = vmatpush.msra.mxu0 %v35
    %344 = vmatpush.msra.mxu0 %v34
    %345 = vmatpush.msra.mxu0 %v33
    %346 = vmatpush.msra.mxu0 %v32
    %347 = vmatmul.f32.gmra.mxu0 %v329
    %v348 = vpop.f32.mrf.mxu0
    %v349 = vadd.f32 0.0, %v348
    %350 = vdwg.mxu0
    %v351 = vadd.f32 %v327, %v349
    %v352 = vmax.f32 %v351, 0.0
    %353 = vst.msk [vmem:[%s326] sm:$0x3] %vm120, %v352
    %354 = vst.msk [vmem:[#allocation2] sm:$0x3] %vm120, %v352
    %v355 = vld [vmem:[#allocation3] sm:$0x3]
    %v356 = vld [vmem:[#allocation3 + $0x2] sm:$0x3]
    %v357 = vld [vmem:[#allocation3 + $0x4] sm:$0x3]
    %v358 = vld [vmem:[#allocation3 + $0x6] sm:$0x3]
    %v359 = vld [vmem:[#allocation3 + $0x8] sm:$0x3]
    %v360 = vld [vmem:[#allocation3 + $0xa] sm:$0x3]
    %v361 = vld [vmem:[#allocation3 + $0xc] sm:$0x3]
    %v362 = vld [vmem:[#allocation3 + $0xe] sm:$0x3]
    %v363 = vld [vmem:[%s4] sm:$0xff]
    %v364 = vld [vmem:[%s4 + $0x8] sm:$0xff]
    %v365 = vld [vmem:[%s4 + $0x10] sm:$0xff]
    %v366 = vld [vmem:[%s4 + $0x18] sm:$0xff]
    %v367 = vld [vmem:[%s5] sm:$0x1]
    %v369 = vperm.slane %v367, 0
    %379 = vst [vmem:[#allocation1] ss:$4 sm:$0xff] %v355
    %s380 = scalar_lea.vmem [#allocation1], 1
    %381 = vst [vmem:[%s380] ss:$4 sm:$0xff] %v356
    %s382 = scalar_lea.vmem [#allocation1], 2
    %383 = vst [vmem:[%s382] ss:$4 sm:$0xff] %v357
    %s384 = scalar_lea.vmem [#allocation1], 3
    %385 = vst [vmem:[%s384] ss:$4 sm:$0xff] %v358
    %s386 = scalar_lea.vmem [#allocation1], 32
    %387 = vst [vmem:[%s386] ss:$4 sm:$0xff] %v359
    %s388 = scalar_lea.vmem [#allocation1], 33
    %389 = vst [vmem:[%s388] ss:$4 sm:$0xff] %v360
    %s390 = scalar_lea.vmem [#allocation1], 34
    %391 = vst [vmem:[%s390] ss:$4 sm:$0xff] %v361
    %s392 = scalar_lea.vmem [#allocation1], 35
    %393 = vst [vmem:[%s392] ss:$4 sm:$0xff] %v362
    %v394 = vld.sshfl [vmem:[#allocation1] sm:$0xff pattern:$0x73625140]
    %v395 = vld.sshfl [vmem:[#allocation1 + $0x20] sm:$0xff pattern:$0x73625140]
    %v396 = vsel %vm131, %v394, 0
    %v398 = vsel %vm131, %v395, 0
    %400 = vmatpush.msra.mxu0 0.0
    %401 = vmatpush.msra.mxu0 0.0
    %402 = vmatpush.msra.mxu0 0.0
    %403 = vmatpush.msra.mxu0 0.0
    %404 = vmatpush.msra.mxu0 0.0
    %405 = vmatpush.msra.mxu0 0.0
    %406 = vmatpush.msra.mxu0 0.0
    %407 = vmatpush.msra.mxu0 0.0
    %408 = vmatpush.msra.mxu0 0.0
    %409 = vmatpush.msra.mxu0 0.0
    %410 = vmatpush.msra.mxu0 0.0
    %411 = vmatpush.msra.mxu0 0.0
    %412 = vmatpush.msra.mxu0 %v366
    %413 = vmatpush.msra.mxu0 %v365
    %414 = vmatpush.msra.mxu0 %v364
    %415 = vmatpush.msra.mxu0 %v363
    %416 = vmatmul.f32.gmra.mxu0 %v396
    %v417 = vpop.f32.mrf.mxu0
    %v418 = vadd.f32 %v369, %v417
    %419 = vmatmul.f32.gmra.mxu0 %v398
    %v420 = vpop.f32.mrf.mxu0
    %v421 = vadd.f32 %v369, %v420
    %422 = vdwg.mxu0
    %v425 = vrot.slane %v418, 2
    %v426 = vrot.slane %v418, 4
    %v427 = vrot.slane %v418, 6
    %v428 = vrot.slane %v421, 2
    %v429 = vrot.slane %v421, 4
    %v430 = vrot.slane %v421, 6
    %vm437 = vcmask 17408
    %438 = vst.msk [vmem:[%s7] sm:$0x3] %vm437, %v418
    %439 = vst.msk [vmem:[%s7 + $0x2] sm:$0x3] %vm437, %v425
    %440 = vst.msk [vmem:[%s7 + $0x4] sm:$0x3] %vm437, %v426
    %441 = vst.msk [vmem:[%s7 + $0x6] sm:$0x3] %vm437, %v427
    %442 = vst.msk [vmem:[%s7 + $0x8] sm:$0x3] %vm437, %v421
    %443 = vst.msk [vmem:[%s7 + $0xa] sm:$0x3] %vm437, %v428
    %444 = vst.msk [vmem:[%s7 + $0xc] sm:$0x3] %vm437, %v429
    %445 = vst.msk [vmem:[%s7 + $0xe] sm:$0x3] %vm437, %v430
    // Predicated region
    $region30: #{rnn_net_forward.1} parent=1 // pred_check
      _
    $region31: #{rnn_net_forward.1} parent=1 // pred_check_branch
      %447 = sbr.rel (0) target = $region33
    $region32: #{rnn_net_forward.1} parent=1 // pred_region
      %449 = vsyncadd [#allocation4], 0
      %s450 = sshll.u32 [#allocation3], 4
      %s451 = int_to_ptr.vmem [resolvable:$true] %s450
      %s452 = sshll.u32 %s6, 4
      %s453 = int_to_ptr.hbm [resolvable:$true] %s452
      %458 = dma.vmem_to_hbm [thread:$0]  %s451, 256, %s453, [#allocation4], 32, 32, 2
    $region33: #{rnn_net_forward.1} parent=1 // pred_fallthru
      _
    // Predicated region
    $region34: #{rnn_net_forward.1} parent=1 // pred_check
      _
    $region35: #{rnn_net_forward.1} parent=1 // pred_check_branch
      %460 = sbr.rel (0) target = $region37
    $region36: #{rnn_net_forward.1} parent=1 // pred_region
      _
    $region37: #{rnn_net_forward.1} parent=1 // pred_fallthru
      _
    // Predicated region
    $region38: #{rnn_net_forward.1} parent=1 // pred_check
      _
    $region39: #{rnn_net_forward.1} parent=1 // pred_check_branch
      %462 = sbr.rel (0) target = $region41
    $region40: #{rnn_net_forward.1} parent=1 // pred_region
      %464 = dma.done [#allocation4], 256
    $region41: #{rnn_net_forward.1} parent=1 // pred_fallthru
      _
    // Predicated region
    $region42: #{rnn_net_forward.1} parent=1 // pred_check
      _
    $region43: #{rnn_net_forward.1} parent=1 // pred_check_branch
      %466 = sbr.rel (0) target = $region45
    $region44: #{rnn_net_forward.1} parent=1 // pred_region
      _
    $region45: #{rnn_net_forward.1} parent=1 // pred_fallthru
      _
    %467 = vsyncpa [#allocation4], 1

</llo_original>
